<compile_context>
chip_gen: v7x
topology: tpu7x:2x2x1
jax: 0.10.0
libtpu: 0.0.40
codegen_flags: <defaults>
</compile_context>

<pallas_src>
import functools

import jax
import jax.numpy as jnp
from jax.experimental import pallas as pl
from jax.experimental.pallas import tpu as pltpu


def _arr_dqn_kernel(x_ref, w1_ref, b1_ref, w2_ref, b2_ref, w3_ref, b3_ref, o_ref):
    def sigmoid(z):
        # One EUP transcendental (tanh) per element; mul/add run on the VPU.
        return 0.5 * (jnp.tanh(0.5 * z) + 1.0)

    # Layer 1: Linear + sigmoid (bf16 matmul operands, f32 accumulate/elementwise)
    h = jnp.dot(x_ref[...], w1_ref[...], preferred_element_type=jnp.float32)
    h = sigmoid(h + b1_ref[...])

    # Layer 2: Linear + sigmoid
    h = jnp.dot(h.astype(w2_ref.dtype), w2_ref[...],
                preferred_element_type=jnp.float32)
    h = sigmoid(h + b2_ref[...])

    # Layer 3: Linear + relu + sigmoid (output dim pre-padded to 128 lanes)
    h = jnp.dot(h.astype(w3_ref.dtype), w3_ref[...],
                preferred_element_type=jnp.float32)
    h = h + b3_ref[...]
    o_ref[...] = sigmoid(jnp.maximum(h, 0.0)).astype(o_ref.dtype)


def arr_dqn_forward(x, params, *, block_batch=1024, matmul_dtype=jnp.bfloat16):
    """x: (B, n_inputs) f32. params: dict of (in,out) weights / (1,out) f32 biases."""
    w1, b1 = params["w1"], params["b1"]
    w2, b2 = params["w2"], params["b2"]
    w3, b3 = params["w3"], params["b3"]

    B, n_in = x.shape
    h0 = w1.shape[1]
    h1 = w2.shape[1]
    n_out = w3.shape[1]

    # --- Lane-dense output: pad the output feature dim to a multiple of 128. ---
    n_out_p = max(128, ((n_out + 127) // 128) * 128)
    if n_out_p != n_out:
        w3 = jnp.pad(w3, ((0, 0), (0, n_out_p - n_out)))
        b3 = jnp.pad(b3, ((0, 0), (0, n_out_p - n_out)))

    # --- Matmul operands in bf16 (biases stay f32 for the elementwise path). ---
    xc = x.astype(matmul_dtype)
    w1c = w1.astype(matmul_dtype)
    w2c = w2.astype(matmul_dtype)
    w3c = w3.astype(matmul_dtype)
    b1 = b1.astype(jnp.float32)
    b2 = b2.astype(jnp.float32)
    b3 = b3.astype(jnp.float32)

    # --- Batch tiling: large tiles amortize the ~0.35us/step pipeline overhead. ---
    b_rounded = ((B + 7) // 8) * 8              # sublane multiple
    tb = min(((block_batch + 7) // 8) * 8, b_rounded)   # rows per grid step
    n_steps = pl.cdiv(B, tb)
    b_padded = n_steps * tb
    if b_padded != B:
        xc = jnp.pad(xc, ((0, b_padded - B), (0, 0)))

    x_spec = pl.BlockSpec((tb, n_in), lambda i: (i, 0))
    out_spec = pl.BlockSpec((tb, n_out_p), lambda i: (i, 0))
    # Weights / biases: constant block index -> DMA'd once, VMEM-resident.
    resident = lambda shape: pl.BlockSpec(shape, lambda i: (0, 0))

    itm = jnp.dtype(matmul_dtype).itemsize
    flops = 2 * b_padded * (n_in * h0 + h0 * h1 + h1 * n_out_p)
    transcendentals = b_padded * (h0 + h1 + n_out_p)      # one tanh per activation
    bytes_accessed = (
        b_padded * n_in * itm                             # streamed x
        + (n_in * h0 + h0 * h1 + h1 * n_out_p) * itm      # resident weights
        + (h0 + h1 + n_out_p) * 4                         # f32 biases
        + b_padded * n_out_p * 4                          # output
    )

    out = pl.pallas_call(
        _arr_dqn_kernel,
        out_shape=jax.ShapeDtypeStruct((b_padded, n_out_p), jnp.float32),
        grid=(n_steps,),
        in_specs=[
            x_spec,
            resident((n_in, h0)), resident((1, h0)),
            resident((h0, h1)), resident((1, h1)),
            resident((h1, n_out_p)), resident((1, n_out_p)),
        ],
        out_specs=out_spec,
        compiler_params=pltpu.CompilerParams(
            dimension_semantics=("parallel",),      # split batch across TCs on v7x
            vmem_limit_bytes=48 * 1024 * 1024,      # headroom under v7x's 64 MiB
        ),
        cost_estimate=pl.CostEstimate(
            flops=flops,
            transcendentals=transcendentals,
            bytes_accessed=bytes_accessed,
        ),
    )(xc, w1c, b1, w2c, b2, w3c, b3)

    # Strip batch and lane padding.
    return out[:B, :n_out]


def init_params(key, n_inputs, n_neurons_per_layers, n_outputs):
    """Deterministic PyTorch-nn.Linear-style uniform init, weights stored (in, out)."""
    h0, h1 = n_neurons_per_layers
    dims = [(n_inputs, h0), (h0, h1), (h1, n_outputs)]
    params = {}
    for i, (fan_in, fan_out) in enumerate(dims, start=1):
        key, kw, kb = jax.random.split(key, 3)
        bound = 1.0 / (fan_in ** 0.5)
        params[f"w{i}"] = jax.random.uniform(
            kw, (fan_in, fan_out), jnp.float32, minval=-bound, maxval=bound)
        params[f"b{i}"] = jax.random.uniform(
            kb, (1, fan_out), jnp.float32, minval=-bound, maxval=bound)
    return params


def _reference_forward(x, params):
    h = jax.nn.sigmoid(x @ params["w1"] + params["b1"])
    h = jax.nn.sigmoid(h @ params["w2"] + params["b2"])
    h = h @ params["w3"] + params["b3"]
    return jax.nn.sigmoid(jnp.maximum(h, 0.0))


if __name__ == "__main__":
    # Small shapes consistent with the module:
    #   n_inputs=16, n_neurons_per_layers=(32, 32), n_outputs=4, batch=8
    # NOTE: at this toy size the call is pure launch/DMA overhead; the kernel is
    # built to win at large batch (thousands of rows), where it streams bf16 x,
    # keeps weights VMEM-resident and is EUP/HBM bound.
    key = jax.random.PRNGKey(0)
    key, kx = jax.random.split(key)

    n_inputs, hidden, n_outputs, batch = 16, (32, 32), 4, 8
    params = init_params(key, n_inputs, hidden, n_outputs)
    x = jax.random.normal(kx, (batch, n_inputs), jnp.float32)

    fwd = jax.jit(functools.partial(arr_dqn_forward, block_batch=1024))
    out = jax.block_until_ready(fwd(x, params))

    ref = _reference_forward(x, params)
    assert out.shape == (batch, n_outputs), out.shape
    # bf16 matmul operands => relaxed tolerance vs the full-f32 reference.
    assert jnp.allclose(out, ref, atol=2e-2, rtol=2e-2), jnp.max(jnp.abs(out - ref))

    print("KERNEL_OK")
</pallas_src>

<mosaic_0001>
module attributes {stable_mosaic.version = 11 : i64} {
  func.func @_arr_dqn_kernel(%arg0: i32, %arg1: memref<8x16xbf16, #tpu.memory_space<vmem>>, %arg2: memref<16x32xbf16, #tpu.memory_space<vmem>>, %arg3: memref<1x32xf32, #tpu.memory_space<vmem>>, %arg4: memref<32x32xbf16, #tpu.memory_space<vmem>>, %arg5: memref<1x32xf32, #tpu.memory_space<vmem>>, %arg6: memref<32x128xbf16, #tpu.memory_space<vmem>>, %arg7: memref<1x128xf32, #tpu.memory_space<vmem>>, %arg8: memref<8x128xf32, #tpu.memory_space<vmem>>) attributes {dimension_semantics = [#tpu.dimension_semantics<parallel>], iteration_bounds = array<i64: 1>, scalar_prefetch = 0 : i64, scratch_operands = 0 : i64, tpu.core_type = #tpu.core_type<tc>, window_params = [{transform_indices = @transform_0, window_bounds = array<i64: 8, 16>}, {pipeline_mode = #tpu.pipeline_mode<synchronous>, transform_indices = @transform_1, window_bounds = array<i64: 16, 32>}, {pipeline_mode = #tpu.pipeline_mode<synchronous>, transform_indices = @transform_2, window_bounds = array<i64: 1, 32>}, {pipeline_mode = #tpu.pipeline_mode<synchronous>, transform_indices = @transform_3, window_bounds = array<i64: 32, 32>}, {pipeline_mode = #tpu.pipeline_mode<synchronous>, transform_indices = @transform_4, window_bounds = array<i64: 1, 32>}, {pipeline_mode = #tpu.pipeline_mode<synchronous>, transform_indices = @transform_5, window_bounds = array<i64: 32, 128>}, {pipeline_mode = #tpu.pipeline_mode<synchronous>, transform_indices = @transform_6, window_bounds = array<i64: 1, 128>}, {transform_indices = @transform_7, window_bounds = array<i64: 8, 128>}]} {
    %c0 = arith.constant 0 : index
    %c0_0 = arith.constant 0 : index
    %0 = vector.load %arg1[%c0, %c0_0] : memref<8x16xbf16, #tpu.memory_space<vmem>>, vector<8x16xbf16>
    %c0_1 = arith.constant 0 : index
    %c0_2 = arith.constant 0 : index
    %1 = vector.load %arg2[%c0_1, %c0_2] : memref<16x32xbf16, #tpu.memory_space<vmem>>, vector<16x32xbf16>
    %cst = arith.constant dense<0.000000e+00> : vector<8x32xf32>
    %2 = tpu.matmul %0, %1, %cst {dimension_numbers = #tpu.dot_dimension_numbers<[1], [0], [0], [1], [0, 0, 1, 1], [], []>} : vector<8x16xbf16>, vector<16x32xbf16>, vector<8x32xf32> -> vector<8x32xf32>
    %c0_3 = arith.constant 0 : index
    %c0_4 = arith.constant 0 : index
    %3 = vector.load %arg3[%c0_3, %c0_4] : memref<1x32xf32, #tpu.memory_space<vmem>>, vector<1x32xf32>
    %4 = vector.broadcast %3 : vector<1x32xf32> to vector<8x32xf32>
    %5 = arith.addf %2, %4 : vector<8x32xf32>
    %cst_5 = arith.constant 5.000000e-01 : f32
    %6 = vector.broadcast %cst_5 : f32 to vector<8x32xf32>
    %7 = arith.mulf %6, %5 : vector<8x32xf32>
    %8 = math.tanh %7 : vector<8x32xf32>
    %cst_6 = arith.constant 1.000000e+00 : f32
    %9 = vector.broadcast %cst_6 : f32 to vector<8x32xf32>
    %10 = arith.addf %8, %9 : vector<8x32xf32>
    %cst_7 = arith.constant 5.000000e-01 : f32
    %11 = vector.broadcast %cst_7 : f32 to vector<8x32xf32>
    %12 = arith.mulf %11, %10 : vector<8x32xf32>
    %13 = arith.truncf %12 : vector<8x32xf32> to vector<8x32xbf16>
    %c0_8 = arith.constant 0 : index
    %c0_9 = arith.constant 0 : index
    %14 = vector.load %arg4[%c0_8, %c0_9] : memref<32x32xbf16, #tpu.memory_space<vmem>>, vector<32x32xbf16>
    %cst_10 = arith.constant dense<0.000000e+00> : vector<8x32xf32>
    %15 = tpu.matmul %13, %14, %cst_10 {dimension_numbers = #tpu.dot_dimension_numbers<[1], [0], [0], [1], [0, 0, 1, 1], [], []>} : vector<8x32xbf16>, vector<32x32xbf16>, vector<8x32xf32> -> vector<8x32xf32>
    %c0_11 = arith.constant 0 : index
    %c0_12 = arith.constant 0 : index
    %16 = vector.load %arg5[%c0_11, %c0_12] : memref<1x32xf32, #tpu.memory_space<vmem>>, vector<1x32xf32>
    %17 = vector.broadcast %16 : vector<1x32xf32> to vector<8x32xf32>
    %18 = arith.addf %15, %17 : vector<8x32xf32>
    %cst_13 = arith.constant 5.000000e-01 : f32
    %19 = vector.broadcast %cst_13 : f32 to vector<8x32xf32>
    %20 = arith.mulf %19, %18 : vector<8x32xf32>
    %21 = math.tanh %20 : vector<8x32xf32>
    %cst_14 = arith.constant 1.000000e+00 : f32
    %22 = vector.broadcast %cst_14 : f32 to vector<8x32xf32>
    %23 = arith.addf %21, %22 : vector<8x32xf32>
    %cst_15 = arith.constant 5.000000e-01 : f32
    %24 = vector.broadcast %cst_15 : f32 to vector<8x32xf32>
    %25 = arith.mulf %24, %23 : vector<8x32xf32>
    %26 = arith.truncf %25 : vector<8x32xf32> to vector<8x32xbf16>
    %c0_16 = arith.constant 0 : index
    %c0_17 = arith.constant 0 : index
    %27 = vector.load %arg6[%c0_16, %c0_17] : memref<32x128xbf16, #tpu.memory_space<vmem>>, vector<32x128xbf16>
    %cst_18 = arith.constant dense<0.000000e+00> : vector<8x128xf32>
    %28 = tpu.matmul %26, %27, %cst_18 {dimension_numbers = #tpu.dot_dimension_numbers<[1], [0], [0], [1], [0, 0, 1, 1], [], []>} : vector<8x32xbf16>, vector<32x128xbf16>, vector<8x128xf32> -> vector<8x128xf32>
    %c0_19 = arith.constant 0 : index
    %c0_20 = arith.constant 0 : index
    %29 = vector.load %arg7[%c0_19, %c0_20] : memref<1x128xf32, #tpu.memory_space<vmem>>, vector<1x128xf32>
    %30 = vector.broadcast %29 : vector<1x128xf32> to vector<8x128xf32>
    %31 = arith.addf %28, %30 : vector<8x128xf32>
    %cst_21 = arith.constant 0.000000e+00 : f32
    %32 = vector.broadcast %cst_21 : f32 to vector<8x128xf32>
    %33 = arith.maximumf %31, %32 : vector<8x128xf32>
    %cst_22 = arith.constant 5.000000e-01 : f32
    %34 = vector.broadcast %cst_22 : f32 to vector<8x128xf32>
    %35 = arith.mulf %34, %33 : vector<8x128xf32>
    %36 = math.tanh %35 : vector<8x128xf32>
    %cst_23 = arith.constant 1.000000e+00 : f32
    %37 = vector.broadcast %cst_23 : f32 to vector<8x128xf32>
    %38 = arith.addf %36, %37 : vector<8x128xf32>
    %cst_24 = arith.constant 5.000000e-01 : f32
    %39 = vector.broadcast %cst_24 : f32 to vector<8x128xf32>
    %40 = arith.mulf %39, %38 : vector<8x128xf32>
    %c0_25 = arith.constant 0 : index
    %c0_26 = arith.constant 0 : index
    %41 = vector.load %arg8[%c0_25, %c0_26] : memref<8x128xf32, #tpu.memory_space<vmem>>, vector<8x128xf32>
    tpu.vector_store %arg8[%c0_25, %c0_26], %40 {strides = array<i32>} : memref<8x128xf32, #tpu.memory_space<vmem>>, vector<8x128xf32>,
    return
  }
  func.func @transform_0(%arg0: i32) -> (i32, i32) {
    %c0_i32 = arith.constant 0 : i32
    %c0_i32_0 = arith.constant 0 : i32
    return %arg0, %c0_i32 : i32, i32
  }
  func.func @transform_1(%arg0: i32) -> (i32, i32) {
    %c0_i32 = arith.constant 0 : i32
    %c0_i32_0 = arith.constant 0 : i32
    %c0_i32_1 = arith.constant 0 : i32
    return %c0_i32, %c0_i32_0 : i32, i32
  }
  func.func @transform_2(%arg0: i32) -> (i32, i32) {
    %c0_i32 = arith.constant 0 : i32
    %c0_i32_0 = arith.constant 0 : i32
    %c0_i32_1 = arith.constant 0 : i32
    return %c0_i32, %c0_i32_0 : i32, i32
  }
  func.func @transform_3(%arg0: i32) -> (i32, i32) {
    %c0_i32 = arith.constant 0 : i32
    %c0_i32_0 = arith.constant 0 : i32
    %c0_i32_1 = arith.constant 0 : i32
    return %c0_i32, %c0_i32_0 : i32, i32
  }
  func.func @transform_4(%arg0: i32) -> (i32, i32) {
    %c0_i32 = arith.constant 0 : i32
    %c0_i32_0 = arith.constant 0 : i32
    %c0_i32_1 = arith.constant 0 : i32
    return %c0_i32, %c0_i32_0 : i32, i32
  }
  func.func @transform_5(%arg0: i32) -> (i32, i32) {
    %c0_i32 = arith.constant 0 : i32
    %c0_i32_0 = arith.constant 0 : i32
    %c0_i32_1 = arith.constant 0 : i32
    return %c0_i32, %c0_i32_0 : i32, i32
  }
  func.func @transform_6(%arg0: i32) -> (i32, i32) {
    %c0_i32 = arith.constant 0 : i32
    %c0_i32_0 = arith.constant 0 : i32
    %c0_i32_1 = arith.constant 0 : i32
    return %c0_i32, %c0_i32_0 : i32, i32
  }
  func.func @transform_7(%arg0: i32) -> (i32, i32) {
    %c0_i32 = arith.constant 0 : i32
    %c0_i32_0 = arith.constant 0 : i32
    return %arg0, %c0_i32 : i32, i32
  }
}

</mosaic_0001>

<llo_original>
// kernel: arr_dqn_forward.1
$region0: #{arr_dqn_forward.1}
  #allocation0 [shape = 'u32[]', space=smem, size = 0x4, offset = 0x4, fixed_abs, tag = 'smem constant byte address 0x4 - core index']
  #allocation1 [shape = 'u32[144,128]{1,0:T(1,128)}', space=vmem, size = 0x12000, scoped, tag = 'internal scratch']
  %s0 = inlined_call_operand.vmem [shape: bf16[8,16], index: 0, kind: input, shape index: {}]
  %s1 = inlined_call_operand.vmem [shape: bf16[16,32], index: 1, kind: input, shape index: {}]
  %s2 = inlined_call_operand.vmem [shape: f32[1,32], index: 2, kind: input, shape index: {}]
  %s3 = inlined_call_operand.vmem [shape: bf16[32,32], index: 3, kind: input, shape index: {}]
  %s4 = inlined_call_operand.vmem [shape: f32[1,32], index: 4, kind: input, shape index: {}]
  %s5 = inlined_call_operand.vmem [shape: bf16[32,128], index: 5, kind: input, shape index: {}]
  %s6 = inlined_call_operand.vmem [shape: f32[1,128], index: 6, kind: input, shape index: {}]
  %s7 = inlined_call_operand.vmem [shape: f32[8,128], index: 7, kind: output, shape index: {}]
  %s8 = sld [smem:[#allocation0]]
  $region38: #{arr_dqn_forward.1} parent=0
    _
  %s10 = ssub.s32 1, %s8
  %s11 = scalar_select 0, %s10, %s8
  // Predicated region
  $region2: #{arr_dqn_forward.1} parent=0 // pred_check
    _
  $region3: #{arr_dqn_forward.1} parent=0 // pred_check_branch
    %13 = sbr.rel (0) target = $region5
  $region4: #{arr_dqn_forward.1} parent=0 // pred_region
    _
  $region5: #{arr_dqn_forward.1} parent=0 // pred_fallthru
    _
  // Predicated region
  $region6: #{arr_dqn_forward.1} parent=0 // pred_check
    _
  $region7: #{arr_dqn_forward.1} parent=0 // pred_check_branch
    %15 = sbr.rel (0) target = $region9
  $region8: #{arr_dqn_forward.1} parent=0 // pred_region
    _
  $region9: #{arr_dqn_forward.1} parent=0 // pred_fallthru
    _
  // Predicated region
  $region10: #{arr_dqn_forward.1} parent=0 // pred_check
    _
  $region11: #{arr_dqn_forward.1} parent=0 // pred_check_branch
    %17 = sbr.rel (0) target = $region13
  $region12: #{arr_dqn_forward.1} parent=0 // pred_region
    _
  $region13: #{arr_dqn_forward.1} parent=0 // pred_fallthru
    _
  // Predicated region
  $region14: #{arr_dqn_forward.1} parent=0 // pred_check
    _
  $region15: #{arr_dqn_forward.1} parent=0 // pred_check_branch
    %19 = sbr.rel (0) target = $region17
  $region16: #{arr_dqn_forward.1} parent=0 // pred_region
    _
  $region17: #{arr_dqn_forward.1} parent=0 // pred_fallthru
    _
  // Predicated region
  $region18: #{arr_dqn_forward.1} parent=0 // pred_check
    _
  $region19: #{arr_dqn_forward.1} parent=0 // pred_check_branch
    %21 = sbr.rel (0) target = $region21
  $region20: #{arr_dqn_forward.1} parent=0 // pred_region
    _
  $region21: #{arr_dqn_forward.1} parent=0 // pred_fallthru
    _
  // Predicated region
  $region22: #{arr_dqn_forward.1} parent=0 // pred_check
    _
  $region23: #{arr_dqn_forward.1} parent=0 // pred_check_branch
    %23 = sbr.rel (0) target = $region25
  $region24: #{arr_dqn_forward.1} parent=0 // pred_region
    _
  $region25: #{arr_dqn_forward.1} parent=0 // pred_fallthru
    _
  // Predicated region
  $region26: #{arr_dqn_forward.1} parent=0 // pred_check
    _
  $region27: #{arr_dqn_forward.1} parent=0 // pred_check_branch
    %25 = sbr.rel (0) target = $region29
  $region28: #{arr_dqn_forward.1} parent=0 // pred_region
    _
  $region29: #{arr_dqn_forward.1} parent=0 // pred_fallthru
    _
  %v27 = vld [vmem:[%s0] sm:$0xf]
  %v28 = vld [vmem:[%s1] sm:$0xf]
  %v29 = vld [vmem:[%s1 + $0x4] sm:$0xf]
  %v30 = vld [vmem:[%s2] sm:$0x1]
  %v32 = vlaneseq
  %v33 = vshrl.u32 %v32, 7
  %v34 = vsub.s32 0, %v33
  %v35 = vrot.slane %v30, %v34
  %v39 = vunpack.c.l.b16 %v28
  %v40 = vunpack.c.l.b16 %v29
  %v41 = vpack.c.b16 %v40, %v39
  %vm43 = vcmask 130048
  %v45 = vsel %vm43, %v27, 0
  %47 = vmatprep.subr.bf16.mxu0 0
  %48 = vmatpush1.bf16.msra.mxu0 %v41
  %49 = vmatprep.subr.bf16.mxu0 0
  %50 = vmatpush1.bf16.msra.mxu0 0
  %51 = vmatprep.subr.bf16.mxu0 0
  %52 = vmatpush1.bf16.msra.mxu0 0
  %53 = vmatprep.subr.bf16.mxu0 0
  %54 = vmatpush1.bf16.msra.mxu0 0
  %55 = vmatprep.subr.bf16.mxu0 0
  %56 = vmatpush1.bf16.msra.mxu0 0
  %57 = vmatprep.subr.bf16.mxu0 0
  %58 = vmatpush1.bf16.msra.mxu0 0
  %59 = vmatprep.subr.bf16.mxu0 0
  %60 = vmatpush1.bf16.msra.mxu0 0
  %61 = vmatprep.subr.bf16.mxu0 0
  %62 = vmatpush1.bf16.msra.mxu0 0
  %63 = vmatprep.subr.bf16.mxu0 0
  %64 = vmatpush1.bf16.msra.mxu0 0
  %65 = vmatprep.subr.bf16.mxu0 0
  %66 = vmatpush1.bf16.msra.mxu0 0
  %67 = vmatprep.subr.bf16.mxu0 0
  %68 = vmatpush1.bf16.msra.mxu0 0
  %69 = vmatprep.subr.bf16.mxu0 0
  %70 = vmatpush1.bf16.msra.mxu0 0
  %71 = vmatprep.subr.bf16.mxu0 0
  %72 = vmatpush1.bf16.msra.mxu0 0
  %73 = vmatprep.subr.bf16.mxu0 0
  %74 = vmatpush1.bf16.msra.mxu0 0
  %75 = vmatprep.subr.bf16.mxu0 0
  %76 = vmatpush1.bf16.msra.mxu0 0
  %77 = vmatprep.subr.bf16.mxu0 0
  %78 = vmatpush1.bf16.msra.mxu0 0
  %79 = vmatprep.mubr.bf16.mxu0 0
  %80 = vmatmul.mubr.bf16.gmra.mrb[0].mxu0 %v45
  %v81 = vpop.f32.mrb[0].mxu0
  %v82 = vadd.f32 %v35, %v81
  %v83 = vpop.f32.mrb[0].mxu0
  %v84 = vpop.f32.mrb[0].mxu0
  %v85 = vpop.f32.mrb[0].mxu0
  %86 = vdwg.mxu0
  %v87 = vmul.f32 %v82, 0.5
  %v88 = vtanh.pop %v87
  %v89 = vadd.f32 %v88, 1.0
  %v90 = vmul.f32 %v89, 0.5
  %v91 = vpack.c.bf16 %v90, %v90
  %v92 = vld [vmem:[%s3] sm:$0xf]
  %v93 = vld [vmem:[%s3 + $0x4] sm:$0xf]
  %v94 = vld [vmem:[%s3 + $0x8] sm:$0xf]
  %v95 = vld [vmem:[%s3 + $0xc] sm:$0xf]
  %v96 = vld [vmem:[%s4] sm:$0x1]
  %v98 = vlaneseq
  %v99 = vshrl.u32 %v98, 7
  %v100 = vsub.s32 0, %v99
  %v101 = vrot.slane %v96, %v100
  %v107 = vunpack.c.l.b16 %v92
  %v108 = vunpack.c.l.b16 %v93
  %v109 = vunpack.c.l.b16 %v94
  %v110 = vunpack.c.l.b16 %v95
  %v111 = vpack.c.b16 %v108, %v107
  %v112 = vpack.c.b16 %v110, %v109
  %vm115 = vcmask 261120
  %v117 = vsel %vm115, %v91, 0
  %119 = vmatprep.subr.bf16.mxu0 0
  %120 = vmatpush1.bf16.msra.mxu0 %v111
  %121 = vmatprep.subr.bf16.mxu0 0
  %122 = vmatpush1.bf16.msra.mxu0 %v112
  %123 = vmatprep.subr.bf16.mxu0 0
  %124 = vmatpush1.bf16.msra.mxu0 0
  %125 = vmatprep.subr.bf16.mxu0 0
  %126 = vmatpush1.bf16.msra.mxu0 0
  %127 = vmatprep.subr.bf16.mxu0 0
  %128 = vmatpush1.bf16.msra.mxu0 0
  %129 = vmatprep.subr.bf16.mxu0 0
  %130 = vmatpush1.bf16.msra.mxu0 0
  %131 = vmatprep.subr.bf16.mxu0 0
  %132 = vmatpush1.bf16.msra.mxu0 0
  %133 = vmatprep.subr.bf16.mxu0 0
  %134 = vmatpush1.bf16.msra.mxu0 0
  %135 = vmatprep.subr.bf16.mxu0 0
  %136 = vmatpush1.bf16.msra.mxu0 0
  %137 = vmatprep.subr.bf16.mxu0 0
  %138 = vmatpush1.bf16.msra.mxu0 0
  %139 = vmatprep.subr.bf16.mxu0 0
  %140 = vmatpush1.bf16.msra.mxu0 0
  %141 = vmatprep.subr.bf16.mxu0 0
  %142 = vmatpush1.bf16.msra.mxu0 0
  %143 = vmatprep.subr.bf16.mxu0 0
  %144 = vmatpush1.bf16.msra.mxu0 0
  %145 = vmatprep.subr.bf16.mxu0 0
  %146 = vmatpush1.bf16.msra.mxu0 0
  %147 = vmatprep.subr.bf16.mxu0 0
  %148 = vmatpush1.bf16.msra.mxu0 0
  %149 = vmatprep.subr.bf16.mxu0 0
  %150 = vmatpush1.bf16.msra.mxu0 0
  %151 = vmatprep.mubr.bf16.mxu0 0
  %152 = vmatmul.mubr.bf16.gmra.mrb[0].mxu0 %v117
  %v153 = vpop.f32.mrb[0].mxu0
  %v154 = vadd.f32 %v101, %v153
  %v155 = vpop.f32.mrb[0].mxu0
  %v156 = vpop.f32.mrb[0].mxu0
  %v157 = vpop.f32.mrb[0].mxu0
  %158 = vdwg.mxu0
  %v159 = vmul.f32 %v154, 0.5
  %v160 = vtanh.pop %v159
  %v161 = vadd.f32 %v160, 1.0
  %v162 = vmul.f32 %v161, 0.5
  %v163 = vpack.c.bf16 %v162, %v162
  %v164 = vld [vmem:[%s5] sm:$0xf]
  %v165 = vld [vmem:[%s5 + $0x4] sm:$0xf]
  %v166 = vld [vmem:[%s5 + $0x8] sm:$0xf]
  %v167 = vld [vmem:[%s5 + $0xc] sm:$0xf]
  %v168 = vld [vmem:[%s6] sm:$0x1]
  %v170 = vlaneseq
  %v171 = vshrl.u32 %v170, 7
  %v172 = vsub.s32 0, %v171
  %v173 = vrot.slane %v168, %v172
  %v179 = vunpack.c.l.b16 %v164
  %v180 = vunpack.c.l.b16 %v165
  %v181 = vunpack.c.l.b16 %v166
  %v182 = vunpack.c.l.b16 %v167
  %v183 = vpack.c.b16 %v180, %v179
  %v184 = vpack.c.b16 %v182, %v181
  %v188 = vsel %vm115, %v163, 0
  %190 = vmatprep.subr.bf16.mxu0 0
  %191 = vmatpush1.bf16.msra.mxu0 %v183
  %192 = vmatprep.subr.bf16.mxu0 0
  %193 = vmatpush1.bf16.msra.mxu0 %v184
  %194 = vmatprep.subr.bf16.mxu0 0
  %195 = vmatpush1.bf16.msra.mxu0 0
  %196 = vmatprep.subr.bf16.mxu0 0
  %197 = vmatpush1.bf16.msra.mxu0 0
  %198 = vmatprep.subr.bf16.mxu0 0
  %199 = vmatpush1.bf16.msra.mxu0 0
  %200 = vmatprep.subr.bf16.mxu0 0
  %201 = vmatpush1.bf16.msra.mxu0 0
  %202 = vmatprep.subr.bf16.mxu0 0
  %203 = vmatpush1.bf16.msra.mxu0 0
  %204 = vmatprep.subr.bf16.mxu0 0
  %205 = vmatpush1.bf16.msra.mxu0 0
  %206 = vmatprep.subr.bf16.mxu0 0
  %207 = vmatpush1.bf16.msra.mxu0 0
  %208 = vmatprep.subr.bf16.mxu0 0
  %209 = vmatpush1.bf16.msra.mxu0 0
  %210 = vmatprep.subr.bf16.mxu0 0
  %211 = vmatpush1.bf16.msra.mxu0 0
  %212 = vmatprep.subr.bf16.mxu0 0
  %213 = vmatpush1.bf16.msra.mxu0 0
  %214 = vmatprep.subr.bf16.mxu0 0
  %215 = vmatpush1.bf16.msra.mxu0 0
  %216 = vmatprep.subr.bf16.mxu0 0
  %217 = vmatpush1.bf16.msra.mxu0 0
  %218 = vmatprep.subr.bf16.mxu0 0
  %219 = vmatpush1.bf16.msra.mxu0 0
  %220 = vmatprep.subr.bf16.mxu0 0
  %221 = vmatpush1.bf16.msra.mxu0 0
  %222 = vmatprep.mubr.bf16.mxu0 0
  %223 = vmatmul.mubr.bf16.gmra.mrb[0].mxu0 %v188
  %v224 = vpop.f32.mrb[0].mxu0
  %v225 = vadd.f32 %v173, %v224
  %v226 = vpop.f32.mrb[0].mxu0
  %v227 = vpop.f32.mrb[0].mxu0
  %v228 = vpop.f32.mrb[0].mxu0
  %229 = vdwg.mxu0
  %v230 = vmax.f32 %v225, 0.0
  %v231 = vmul.f32 %v230, 0.5
  %v232 = vtanh.pop %v231
  %v233 = vadd.f32 %v232, 1.0
  %v234 = vmul.f32 %v233, 0.5
  %235 = vst [vmem:[%s7] sm:$0xff] %v234
  // Predicated region
  $region30: #{arr_dqn_forward.1} parent=0 // pred_check
    _
  $region31: #{arr_dqn_forward.1} parent=0 // pred_check_branch
    %237 = sbr.rel (0) target = $region33
  $region32: #{arr_dqn_forward.1} parent=0 // pred_region
    _
  $region33: #{arr_dqn_forward.1} parent=0 // pred_fallthru
    _
  // Predicated region
  $region34: #{arr_dqn_forward.1} parent=0 // pred_check
    _
  $region35: #{arr_dqn_forward.1} parent=0 // pred_check_branch
    %239 = sbr.rel (0) target = $region37
  $region36: #{arr_dqn_forward.1} parent=0 // pred_region
    _
  $region37: #{arr_dqn_forward.1} parent=0 // pred_fallthru
    _

</llo_original>
